<compile_context>
chip_gen: v5e
topology: v5e:2x2
jax: 0.10.0
libtpu: 0.0.40
codegen_flags: <defaults>
</compile_context>

<pallas_src>
import numpy as np
import jax
import jax.numpy as jnp
from jax.experimental import pallas as pl
from jax.experimental.pallas import tpu as pltpu

# ----------------------------- configuration -------------------------------
B = 2              # batch
C_IN = 3           # image channels (RGB, as ResNet expects)
H = W = 16         # spatial
SEQ = 8            # text sequence length
VOCAB = 64         # stand-in vocab
HIDDEN = 32        # stand-in for Phi hidden_size
BACKBONE_DIM = 64  # stand-in for ResNet50's 2048-d pooled features
EMB = 32           # config.embedding_dim
TEMPERATURE = 0.07

K_PATCH = 9 * C_IN          # 27 (3x3 conv, C_IN channels)
K_PAD = 128                 # lane-aligned contraction dim for the MXU
SPATIAL = H * W             # 256 patch rows per image


# ------------------------------ fused kernel --------------------------------
def fused_dual_encoder_kernel(tok_ref,        # SMEM [B, SEQ] int32 (scalar prefetch)
                              pat_ref,        # VMEM [SPATIAL, K_PAD] bf16 (this batch's patches)
                              conv_w_ref,     # VMEM [K_PAD, BACKBONE_DIM] bf16
                              conv_b_ref,     # VMEM [1, BACKBONE_DIM] f32
                              fc_w_ref,       # VMEM [BACKBONE_DIM, EMB] bf16
                              fc_b_ref,       # VMEM [1, EMB] f32
                              proj_w_ref,     # VMEM [HIDDEN, EMB] bf16
                              proj_b_ref,     # VMEM [1, EMB] f32
                              tok_emb_hbm,    # HBM (pl.ANY) [VOCAB, HIDDEN] f32
                              scale_ref,      # SMEM [1] f32 (exp(logit_scale), pre-computed)
                              lpi_ref,        # VMEM [B, B] f32 output (logits_per_image)
                              feat_ref,       # VMEM scratch [B, BACKBONE_DIM] f32 (pooled feats)
                              txt_rows_ref,   # VMEM scratch [B, HIDDEN] f32 (gathered rows)
                              dma_sem):       # DMA semaphores (B,)
    f32 = jnp.float32
    bf16 = jnp.bfloat16
    b = pl.program_id(0)
    last = pl.num_programs(0) - 1

    # ---- text last-token row gather: manual DMA from the HBM-resident table.
    # Token ids come from SMEM (scalar prefetch); only B rows ever touch VMEM.
    # TODO(synk): frozen Phi causal-LM not translated; stand-in = embedding of
    # the last token (mimics hidden_states[-1][:, -1, :], no grad).
    def txt_row_copy(i):
        tid = tok_ref[i, SEQ - 1]
        return pltpu.make_async_copy(tok_emb_hbm.at[pl.ds(tid, 1)],
                                     txt_rows_ref.at[pl.ds(i, 1)],
                                     dma_sem.at[i])

    @pl.when(b == 0)
    def _prefetch_text():
        for i in range(B):
            txt_row_copy(i).start()        # overlaps with the conv matmuls below

    # ---- conv stem for this batch: one lane-aligned MXU matmul (bf16 operands,
    #      f32 accumulation), bias + ReLU in f32 on the VPU.
    # TODO(synk): full ResNet50 backbone not translated; conv-stem stand-in only.
    h = jnp.dot(pat_ref[...], conv_w_ref[...],
                preferred_element_type=f32)                  # [SPATIAL, BACKBONE_DIM]
    h = jnp.maximum(h + conv_b_ref[...], 0.0)

    # ---- global average pool: exact f32 sublane reduction (XLU slot), no
    #      selector matmul, no iota/where filler.
    feat_ref[pl.ds(b, 1), :] = jnp.sum(h, axis=0, keepdims=True) * (1.0 / SPATIAL)

    # ---- finalize on the last grid step: heads, L2 norm, scaled similarity.
    @pl.when(b == last)
    def _finalize():
        for i in range(B):
            txt_row_copy(i).wait()

        img_feat = feat_ref[...]                              # [B, BACKBONE_DIM] f32
        txt_hidden = txt_rows_ref[...]                        # [B, HIDDEN] f32

        # bf16 matmul operands (explicit, mirrored in the reference), f32 accumulate.
        img_emb = jnp.dot(img_feat.astype(bf16), fc_w_ref[...],
                          preferred_element_type=f32) + fc_b_ref[...]
        txt_emb = jnp.dot(txt_hidden.astype(bf16), proj_w_ref[...],
                          preferred_element_type=f32) + proj_b_ref[...]

        # L2 normalize: rsqrt on the squared norm (EUP); eps^2 clamp keeps
        # F.normalize(dim=-1, eps=1e-12) semantics.
        def l2norm(x):
            ss = jnp.sum(x * x, axis=-1, keepdims=True)
            return x * jax.lax.rsqrt(jnp.maximum(ss, 1e-24))

        img_emb = l2norm(img_emb)
        txt_emb = l2norm(txt_emb)

        # Scaled similarity: explicit bf16 operands (documented precision), f32 acc.
        nt = (((1,), (1,)), ((), ()))
        lpi_ref[...] = scale_ref[0] * jax.lax.dot_general(
            img_emb.astype(bf16), txt_emb.astype(bf16), nt,
            preferred_element_type=f32)


# ------------------------------- glue / wrapper -----------------------------
def init_params(key):
    ks = jax.random.split(key, 6)
    return {
        "conv_w": 0.1 * jax.random.normal(ks[0], (K_PATCH, BACKBONE_DIM), jnp.float32),
        "conv_b": 0.1 * jax.random.normal(ks[1], (1, BACKBONE_DIM), jnp.float32),
        "tok_emb": 0.1 * jax.random.normal(ks[2], (VOCAB, HIDDEN), jnp.float32),
        "fc_w": 0.1 * jax.random.normal(ks[3], (BACKBONE_DIM, EMB), jnp.float32),
        "fc_b": jnp.zeros((1, EMB), jnp.float32),
        "proj_w": 0.1 * jax.random.normal(ks[4], (HIDDEN, EMB), jnp.float32),
        "proj_b": jnp.zeros((1, EMB), jnp.float32),
        "logit_scale": jnp.full((1,), np.log(1.0 / TEMPERATURE), jnp.float32),
    }


def _im2col(image_nchw):
    """NCHW -> lane-dense [B*H*W, K_PAD] bf16 patch matrix (3x3, stride 1, pad 1)."""
    x = jnp.transpose(image_nchw, (0, 2, 3, 1)).astype(jnp.float32)     # NHWC
    xp = jnp.pad(x, ((0, 0), (1, 1), (1, 1), (0, 0)))
    slabs = [xp[:, di:di + H, dj:dj + W, :] for di in range(3) for dj in range(3)]
    pat = jnp.concatenate(slabs, axis=-1).reshape(B * SPATIAL, K_PATCH)
    pat = jnp.pad(pat, ((0, 0), (0, K_PAD - K_PATCH)))                  # K: 27 -> 128
    return pat.astype(jnp.bfloat16)                                     # MXU operand dtype


def dual_encoder_forward(image_nchw, text_tokens, params):
    pat = _im2col(image_nchw)                                           # [B*SPATIAL, K_PAD] bf16
    tok = text_tokens.astype(jnp.int32)

    conv_w = jnp.pad(params["conv_w"],
                     ((0, K_PAD - K_PATCH), (0, 0))).astype(jnp.bfloat16)
    fc_w = params["fc_w"].astype(jnp.bfloat16)
    proj_w = params["proj_w"].astype(jnp.bfloat16)
    scale_exp = jnp.exp(params["logit_scale"])                          # exp hoisted out of kernel

    grid_spec = pltpu.PrefetchScalarGridSpec(
        num_scalar_prefetch=1,                 # token ids -> SMEM
        grid=(B,),                             # one spatial-complete tile per batch
        in_specs=[
            pl.BlockSpec((SPATIAL, K_PAD), lambda i, tok: (i, 0)),      # patches
            pl.BlockSpec((K_PAD, BACKBONE_DIM), lambda i, tok: (0, 0)), # conv_w
            pl.BlockSpec((1, BACKBONE_DIM), lambda i, tok: (0, 0)),     # conv_b
            pl.BlockSpec((BACKBONE_DIM, EMB), lambda i, tok: (0, 0)),   # fc_w
            pl.BlockSpec((1, EMB), lambda i, tok: (0, 0)),              # fc_b
            pl.BlockSpec((HIDDEN, EMB), lambda i, tok: (0, 0)),         # proj_w
            pl.BlockSpec((1, EMB), lambda i, tok: (0, 0)),              # proj_b
            pl.BlockSpec(memory_space=pl.ANY),                          # tok_emb stays in HBM
            pl.BlockSpec(memory_space=pltpu.MemorySpace.SMEM),          # exp(logit_scale)
        ],
        out_specs=pl.BlockSpec((B, B), lambda i, tok: (0, 0)),
        scratch_shapes=[
            pltpu.VMEM((B, BACKBONE_DIM), jnp.float32),   # pooled image features
            pltpu.VMEM((B, HIDDEN), jnp.float32),         # gathered last-token rows
            pltpu.SemaphoreType.DMA((B,)),
        ],
    )

    logits_per_image = pl.pallas_call(
        fused_dual_encoder_kernel,
        out_shape=jax.ShapeDtypeStruct((B, B), jnp.float32),
        grid_spec=grid_spec,
        compiler_params=pltpu.CompilerParams(
            # Finalize consumes scratch written by earlier steps -> must stay
            # sequential ("arbitrary"). See TODO(synk) in the header for the
            # v7x 2-TC split. vmem_limit_bytes omitted (footprint << defaults).
            dimension_semantics=("arbitrary",),
        ),
    )(tok, pat, conv_w, params["conv_b"], fc_w, params["fc_b"],
      proj_w, params["proj_b"], params["tok_emb"], scale_exp)

    logits_per_text = logits_per_image.T          # matches logits_per_image.t()
    return logits_per_image, logits_per_text


# --------------------------- pure-JAX reference ------------------------------
def reference_forward(image_nchw, text_tokens, params):
    f32 = jnp.float32
    hi = jax.lax.Precision.HIGHEST

    def bf(a):  # mirror the kernel's explicit bf16 rounding of matmul operands
        return a.astype(jnp.bfloat16).astype(f32)

    x = jnp.transpose(image_nchw, (0, 2, 3, 1)).astype(f32)
    xp = jnp.pad(x, ((0, 0), (1, 1), (1, 1), (0, 0)))
    slabs = [xp[:, i:i + H, j:j + W, :] for i in range(3) for j in range(3)]
    pat = jnp.concatenate(slabs, axis=-1).reshape(B, SPATIAL, K_PATCH)

    hconv = jnp.einsum("bsk,kn->bsn", bf(pat), bf(params["conv_w"]), precision=hi)
    hconv = jnp.maximum(hconv + params["conv_b"], 0.0)
    feat = jnp.mean(hconv, axis=1)                                   # [B, BACKBONE_DIM]

    txt_hidden = params["tok_emb"][text_tokens[:, -1]]               # [B, HIDDEN] f32

    img_emb = jnp.dot(bf(feat), bf(params["fc_w"]), precision=hi) + params["fc_b"]
    txt_emb = jnp.dot(bf(txt_hidden), bf(params["proj_w"]), precision=hi) + params["proj_b"]

    def l2norm(v):  # F.normalize(dim=-1, eps=1e-12)
        n = jnp.sqrt(jnp.sum(v * v, axis=-1, keepdims=True))
        return v / jnp.maximum(n, 1e-12)

    img_emb, txt_emb = l2norm(img_emb), l2norm(txt_emb)
    logits = jnp.exp(params["logit_scale"][0]) * jnp.dot(bf(img_emb), bf(txt_emb).T,
                                                         precision=hi)
    return logits, logits.T


# ---------------------------------- main -------------------------------------
if __name__ == "__main__":
    key = jax.random.PRNGKey(0)
    k_img, k_tok, k_par = jax.random.split(key, 3)

    image = jax.random.normal(k_img, (B, C_IN, H, W), jnp.float32)   # NCHW like PyTorch
    text_tokens = jax.random.randint(k_tok, (B, SEQ), 0, VOCAB, jnp.int32)
    params = init_params(k_par)

    fwd = jax.jit(dual_encoder_forward)
    lpi, lpt = fwd(image, text_tokens, params)
    jax.block_until_ready((lpi, lpt))

    ref_lpi, ref_lpt = reference_forward(image, text_tokens, params)
    # Kernel and reference apply identical bf16 rounding to all matmul operands
    # (f32 accumulation), so only accumulation-order noise remains.
    np.testing.assert_allclose(np.asarray(lpi), np.asarray(ref_lpi), rtol=2e-3, atol=2e-3)
    np.testing.assert_allclose(np.asarray(lpt), np.asarray(ref_lpt), rtol=2e-3, atol=2e-3)
    np.testing.assert_allclose(np.asarray(lpi), np.asarray(lpt).T, rtol=0, atol=0)

    print("KERNEL_OK")
</pallas_src>

<mosaic_0001>
module attributes {stable_mosaic.version = 11 : i64} {
  func.func @fused_dual_encoder_kernel(%arg0: i32, %arg1: memref<2x8xi32, #tpu.memory_space<smem>>, %arg2: memref<256x128xbf16, #tpu.memory_space<vmem>>, %arg3: memref<128x64xbf16, #tpu.memory_space<vmem>>, %arg4: memref<1x64xf32, #tpu.memory_space<vmem>>, %arg5: memref<64x32xbf16, #tpu.memory_space<vmem>>, %arg6: memref<1x32xf32, #tpu.memory_space<vmem>>, %arg7: memref<32x32xbf16, #tpu.memory_space<vmem>>, %arg8: memref<1x32xf32, #tpu.memory_space<vmem>>, %arg9: memref<64x32xf32, #tpu.memory_space<any>>, %arg10: memref<1xf32, #tpu.memory_space<smem>>, %arg11: memref<2x2xf32, #tpu.memory_space<vmem>>, %arg12: memref<2x64xf32, #tpu.memory_space<vmem>>, %arg13: memref<2x32xf32, #tpu.memory_space<vmem>>, %arg14: memref<2x!tpu.dma_semaphore, #tpu.memory_space<semaphore_mem>>) attributes {dimension_semantics = [#tpu.dimension_semantics<arbitrary>], iteration_bounds = array<i64: 2>, scalar_prefetch = 1 : i64, scratch_operands = 3 : i64, tpu.core_type = #tpu.core_type<tc>, window_params = [{transform_indices = @transform_0, window_bounds = array<i64: 256, 128>}, {pipeline_mode = #tpu.pipeline_mode<synchronous>, transform_indices = @transform_1, window_bounds = array<i64: 128, 64>}, {pipeline_mode = #tpu.pipeline_mode<synchronous>, transform_indices = @transform_2, window_bounds = array<i64: 1, 64>}, {pipeline_mode = #tpu.pipeline_mode<synchronous>, transform_indices = @transform_3, window_bounds = array<i64: 64, 32>}, {pipeline_mode = #tpu.pipeline_mode<synchronous>, transform_indices = @transform_4, window_bounds = array<i64: 1, 32>}, {pipeline_mode = #tpu.pipeline_mode<synchronous>, transform_indices = @transform_5, window_bounds = array<i64: 32, 32>}, {pipeline_mode = #tpu.pipeline_mode<synchronous>, transform_indices = @transform_6, window_bounds = array<i64: 1, 32>}, {}, {transform_indices = @transform_8, window_bounds = array<i64: 1>}, {pipeline_mode = #tpu.pipeline_mode<synchronous>, transform_indices = @transform_9, window_bounds = array<i64: 2, 2>}]} {
    %c0_i32 = arith.constant 0 : i32
    %0 = arith.cmpi eq, %arg0, %c0_i32 : i32
    %1 = arith.extui %0 : i1 to i32
    %c0_i32_0 = arith.constant 0 : i32
    %2 = arith.cmpi ne, %1, %c0_i32_0 : i32
    scf.if %2 {
      %c0_11 = arith.constant 0 : index
      %c7 = arith.constant 7 : index
      %20 = memref.load %arg1[%c0_11, %c7] : memref<2x8xi32, #tpu.memory_space<smem>>
      %c0_i32_12 = arith.constant 0 : i32
      %c0_i32_13 = arith.constant 0 : i32
      %21 = tpu.memref_slice %arg9[%20, %c0_i32_13] : memref<64x32xf32, #tpu.memory_space<any>> -> memref<1x32xf32, #tpu.memory_space<any>>
      %c0_i32_14 = arith.constant 0 : i32
      %c0_i32_15 = arith.constant 0 : i32
      %22 = tpu.memref_slice %arg13[%c0_i32_14, %c0_i32_15] : memref<2x32xf32, #tpu.memory_space<vmem>> -> memref<1x32xf32, #tpu.memory_space<vmem>>
      %23 = tpu.memref_slice %arg14[%c0_i32_12] : memref<2x!tpu.dma_semaphore, #tpu.memory_space<semaphore_mem>> -> memref<1x!tpu.dma_semaphore, #tpu.memory_space<semaphore_mem>>
      %24 = tpu.memref_squeeze %23 : memref<1x!tpu.dma_semaphore, #tpu.memory_space<semaphore_mem>> -> memref<!tpu.dma_semaphore, #tpu.memory_space<semaphore_mem>>
      tpu.enqueue_dma source(%21 : memref<1x32xf32, #tpu.memory_space<any>>) target(%22 : memref<1x32xf32, #tpu.memory_space<vmem>>) target_semaphore(%24 : memref<!tpu.dma_semaphore, #tpu.memory_space<semaphore_mem>>)
      %c1 = arith.constant 1 : index
      %c7_16 = arith.constant 7 : index
      %25 = memref.load %arg1[%c1, %c7_16] : memref<2x8xi32, #tpu.memory_space<smem>>
      %c1_i32_17 = arith.constant 1 : i32
      %c0_i32_18 = arith.constant 0 : i32
      %26 = tpu.memref_slice %arg9[%25, %c0_i32_18] : memref<64x32xf32, #tpu.memory_space<any>> -> memref<1x32xf32, #tpu.memory_space<any>>
      %c1_i32_19 = arith.constant 1 : i32
      %c0_i32_20 = arith.constant 0 : i32
      %27 = tpu.memref_slice %arg13[%c1_i32_19, %c0_i32_20] : memref<2x32xf32, #tpu.memory_space<vmem>> -> memref<1x32xf32, #tpu.memory_space<vmem>>
      %28 = tpu.memref_slice %arg14[%c1_i32_17] : memref<2x!tpu.dma_semaphore, #tpu.memory_space<semaphore_mem>> -> memref<1x!tpu.dma_semaphore, #tpu.memory_space<semaphore_mem>>
      %29 = tpu.memref_squeeze %28 : memref<1x!tpu.dma_semaphore, #tpu.memory_space<semaphore_mem>> -> memref<!tpu.dma_semaphore, #tpu.memory_space<semaphore_mem>>
      tpu.enqueue_dma source(%26 : memref<1x32xf32, #tpu.memory_space<any>>) target(%27 : memref<1x32xf32, #tpu.memory_space<vmem>>) target_semaphore(%29 : memref<!tpu.dma_semaphore, #tpu.memory_space<semaphore_mem>>)
    } else {
    }
    %c0 = arith.constant 0 : index
    %c0_1 = arith.constant 0 : index
    %3 = vector.load %arg2[%c0, %c0_1] : memref<256x128xbf16, #tpu.memory_space<vmem>>, vector<256x128xbf16>
    %c0_2 = arith.constant 0 : index
    %c0_3 = arith.constant 0 : index
    %4 = vector.load %arg3[%c0_2, %c0_3] : memref<128x64xbf16, #tpu.memory_space<vmem>>, vector<128x64xbf16>
    %cst = arith.constant dense<0.000000e+00> : vector<256x64xf32>
    %5 = tpu.matmul %3, %4, %cst {dimension_numbers = #tpu.dot_dimension_numbers<[1], [0], [0], [1], [0, 0, 1, 1], [], []>} : vector<256x128xbf16>, vector<128x64xbf16>, vector<256x64xf32> -> vector<256x64xf32>
    %c0_4 = arith.constant 0 : index
    %c0_5 = arith.constant 0 : index
    %6 = vector.load %arg4[%c0_4, %c0_5] : memref<1x64xf32, #tpu.memory_space<vmem>>, vector<1x64xf32>
    %7 = vector.broadcast %6 : vector<1x64xf32> to vector<256x64xf32>
    %8 = arith.addf %5, %7 : vector<256x64xf32>
    %cst_6 = arith.constant 0.000000e+00 : f32
    %9 = vector.broadcast %cst_6 : f32 to vector<256x64xf32>
    %10 = arith.maximumf %8, %9 : vector<256x64xf32>
    %cst_7 = arith.constant dense<0.000000e+00> : vector<64xf32>
    %11 = vector.multi_reduction <add>, %10, %cst_7 [0] : vector<256x64xf32> to vector<64xf32>
    %12 = vector.shape_cast %11 : vector<64xf32> to vector<1x64xf32>
    %cst_8 = arith.constant 3.906250e-03 : f32
    %13 = vector.broadcast %cst_8 : f32 to vector<1x64xf32>
    %14 = arith.mulf %12, %13 : vector<1x64xf32>
    %15 = arith.index_cast %arg0 : i32 to index
    %c0_9 = arith.constant 0 : index
    %16 = vector.load %arg12[%15, %c0_9] : memref<2x64xf32, #tpu.memory_space<vmem>>, vector<1x64xf32>
    tpu.vector_store %arg12[%15, %c0_9], %14 {strides = array<i32>} : memref<2x64xf32, #tpu.memory_space<vmem>>, vector<1x64xf32>,
    %c1_i32 = arith.constant 1 : i32
    %17 = arith.cmpi eq, %arg0, %c1_i32 : i32
    %18 = arith.extui %17 : i1 to i32
    %c0_i32_10 = arith.constant 0 : i32
    %19 = arith.cmpi ne, %18, %c0_i32_10 : i32
    scf.if %19 {
      %c0_11 = arith.constant 0 : index
      %c7 = arith.constant 7 : index
      %20 = memref.load %arg1[%c0_11, %c7] : memref<2x8xi32, #tpu.memory_space<smem>>
      %c0_i32_12 = arith.constant 0 : i32
      %c0_i32_13 = arith.constant 0 : i32
      %21 = tpu.memref_slice %arg9[%20, %c0_i32_13] : memref<64x32xf32, #tpu.memory_space<any>> -> memref<1x32xf32, #tpu.memory_space<any>>
      %c0_i32_14 = arith.constant 0 : i32
      %c0_i32_15 = arith.constant 0 : i32
      %22 = tpu.memref_slice %arg13[%c0_i32_14, %c0_i32_15] : memref<2x32xf32, #tpu.memory_space<vmem>> -> memref<1x32xf32, #tpu.memory_space<vmem>>
      %23 = tpu.memref_slice %arg14[%c0_i32_12] : memref<2x!tpu.dma_semaphore, #tpu.memory_space<semaphore_mem>> -> memref<1x!tpu.dma_semaphore, #tpu.memory_space<semaphore_mem>>
      %24 = tpu.memref_squeeze %23 : memref<1x!tpu.dma_semaphore, #tpu.memory_space<semaphore_mem>> -> memref<!tpu.dma_semaphore, #tpu.memory_space<semaphore_mem>>
      tpu.wait_dma2 semaphore(%24 : memref<!tpu.dma_semaphore, #tpu.memory_space<semaphore_mem>>) src(%21 : memref<1x32xf32, #tpu.memory_space<any>>) dst(%22 : memref<1x32xf32, #tpu.memory_space<vmem>>)
      %c1 = arith.constant 1 : index
      %c7_16 = arith.constant 7 : index
      %25 = memref.load %arg1[%c1, %c7_16] : memref<2x8xi32, #tpu.memory_space<smem>>
      %c1_i32_17 = arith.constant 1 : i32
      %c0_i32_18 = arith.constant 0 : i32
      %26 = tpu.memref_slice %arg9[%25, %c0_i32_18] : memref<64x32xf32, #tpu.memory_space<any>> -> memref<1x32xf32, #tpu.memory_space<any>>
      %c1_i32_19 = arith.constant 1 : i32
      %c0_i32_20 = arith.constant 0 : i32
      %27 = tpu.memref_slice %arg13[%c1_i32_19, %c0_i32_20] : memref<2x32xf32, #tpu.memory_space<vmem>> -> memref<1x32xf32, #tpu.memory_space<vmem>>
      %28 = tpu.memref_slice %arg14[%c1_i32_17] : memref<2x!tpu.dma_semaphore, #tpu.memory_space<semaphore_mem>> -> memref<1x!tpu.dma_semaphore, #tpu.memory_space<semaphore_mem>>
      %29 = tpu.memref_squeeze %28 : memref<1x!tpu.dma_semaphore, #tpu.memory_space<semaphore_mem>> -> memref<!tpu.dma_semaphore, #tpu.memory_space<semaphore_mem>>
      tpu.wait_dma2 semaphore(%29 : memref<!tpu.dma_semaphore, #tpu.memory_space<semaphore_mem>>) src(%26 : memref<1x32xf32, #tpu.memory_space<any>>) dst(%27 : memref<1x32xf32, #tpu.memory_space<vmem>>)
      %c0_21 = arith.constant 0 : index
      %c0_22 = arith.constant 0 : index
      %30 = vector.load %arg12[%c0_21, %c0_22] : memref<2x64xf32, #tpu.memory_space<vmem>>, vector<2x64xf32>
      %c0_23 = arith.constant 0 : index
      %c0_24 = arith.constant 0 : index
      %31 = vector.load %arg13[%c0_23, %c0_24] : memref<2x32xf32, #tpu.memory_space<vmem>>, vector<2x32xf32>
      %32 = arith.truncf %30 : vector<2x64xf32> to vector<2x64xbf16>
      %c0_25 = arith.constant 0 : index
      %c0_26 = arith.constant 0 : index
      %33 = vector.load %arg5[%c0_25, %c0_26] : memref<64x32xbf16, #tpu.memory_space<vmem>>, vector<64x32xbf16>
      %cst_27 = arith.constant dense<0.000000e+00> : vector<2x32xf32>
      %34 = tpu.matmul %32, %33, %cst_27 {dimension_numbers = #tpu.dot_dimension_numbers<[1], [0], [0], [1], [0, 0, 1, 1], [], []>} : vector<2x64xbf16>, vector<64x32xbf16>, vector<2x32xf32> -> vector<2x32xf32>
      %c0_28 = arith.constant 0 : index
      %c0_29 = arith.constant 0 : index
      %35 = vector.load %arg6[%c0_28, %c0_29] : memref<1x32xf32, #tpu.memory_space<vmem>>, vector<1x32xf32>
      %36 = vector.broadcast %35 : vector<1x32xf32> to vector<2x32xf32>
      %37 = arith.addf %34, %36 : vector<2x32xf32>
      %38 = arith.truncf %31 : vector<2x32xf32> to vector<2x32xbf16>
      %c0_30 = arith.constant 0 : index
      %c0_31 = arith.constant 0 : index
      %39 = vector.load %arg7[%c0_30, %c0_31] : memref<32x32xbf16, #tpu.memory_space<vmem>>, vector<32x32xbf16>
      %cst_32 = arith.constant dense<0.000000e+00> : vector<2x32xf32>
      %40 = tpu.matmul %38, %39, %cst_32 {dimension_numbers = #tpu.dot_dimension_numbers<[1], [0], [0], [1], [0, 0, 1, 1], [], []>} : vector<2x32xbf16>, vector<32x32xbf16>, vector<2x32xf32> -> vector<2x32xf32>
      %c0_33 = arith.constant 0 : index
      %c0_34 = arith.constant 0 : index
      %41 = vector.load %arg8[%c0_33, %c0_34] : memref<1x32xf32, #tpu.memory_space<vmem>>, vector<1x32xf32>
      %42 = vector.broadcast %41 : vector<1x32xf32> to vector<2x32xf32>
      %43 = arith.addf %40, %42 : vector<2x32xf32>
      %44 = arith.mulf %37, %37 : vector<2x32xf32>
      %cst_35 = arith.constant dense<0.000000e+00> : vector<2xf32>
      %45 = vector.multi_reduction <add>, %44, %cst_35 [1] : vector<2x32xf32> to vector<2xf32>
      %46 = vector.shape_cast %45 : vector<2xf32> to vector<2x1xf32>
      %cst_36 = arith.constant 1.000000e-24 : f32
      %47 = vector.broadcast %cst_36 : f32 to vector<2x1xf32>
      %48 = arith.maximumf %46, %47 : vector<2x1xf32>
      %49 = math.rsqrt %48 : vector<2x1xf32>
      %50 = vector.broadcast %49 : vector<2x1xf32> to vector<2x32xf32>
      %51 = arith.mulf %37, %50 : vector<2x32xf32>
      %52 = arith.mulf %43, %43 : vector<2x32xf32>
      %cst_37 = arith.constant dense<0.000000e+00> : vector<2xf32>
      %53 = vector.multi_reduction <add>, %52, %cst_37 [1] : vector<2x32xf32> to vector<2xf32>
      %54 = vector.shape_cast %53 : vector<2xf32> to vector<2x1xf32>
      %cst_38 = arith.constant 1.000000e-24 : f32
      %55 = vector.broadcast %cst_38 : f32 to vector<2x1xf32>
      %56 = arith.maximumf %54, %55 : vector<2x1xf32>
      %57 = math.rsqrt %56 : vector<2x1xf32>
      %58 = vector.broadcast %57 : vector<2x1xf32> to vector<2x32xf32>
      %59 = arith.mulf %43, %58 : vector<2x32xf32>
      %c0_39 = arith.constant 0 : index
      %60 = memref.load %arg10[%c0_39] : memref<1xf32, #tpu.memory_space<smem>>
      %61 = arith.truncf %51 : vector<2x32xf32> to vector<2x32xbf16>
      %62 = arith.truncf %59 : vector<2x32xf32> to vector<2x32xbf16>
      %cst_40 = arith.constant dense<0.000000e+00> : vector<2x2xf32>
      %63 = tpu.matmul %61, %62, %cst_40 {dimension_numbers = #tpu.dot_dimension_numbers<[1], [1], [0], [0], [0, 0, 1, 0], [], []>} : vector<2x32xbf16>, vector<2x32xbf16>, vector<2x2xf32> -> vector<2x2xf32>
      %64 = vector.broadcast %60 : f32 to vector<2x2xf32>
      %65 = arith.mulf %64, %63 : vector<2x2xf32>
      %c0_41 = arith.constant 0 : index
      %c0_42 = arith.constant 0 : index
      %66 = vector.load %arg11[%c0_41, %c0_42] : memref<2x2xf32, #tpu.memory_space<vmem>>, vector<2x2xf32>
      tpu.vector_store %arg11[%c0_41, %c0_42], %65 {strides = array<i32>} : memref<2x2xf32, #tpu.memory_space<vmem>>, vector<2x2xf32>,
    } else {
    }
    return
  }
  func.func @transform_0(%arg0: i32, %arg1: memref<2x8xi32, #tpu.memory_space<smem>>) -> (i32, i32) {
    %c0_i32 = arith.constant 0 : i32
    %c0_i32_0 = arith.constant 0 : i32
    return %arg0, %c0_i32 : i32, i32
  }
  func.func @transform_1(%arg0: i32, %arg1: memref<2x8xi32, #tpu.memory_space<smem>>) -> (i32, i32) {
    %c0_i32 = arith.constant 0 : i32
    %c0_i32_0 = arith.constant 0 : i32
    %c0_i32_1 = arith.constant 0 : i32
    return %c0_i32, %c0_i32_0 : i32, i32
  }
  func.func @transform_2(%arg0: i32, %arg1: memref<2x8xi32, #tpu.memory_space<smem>>) -> (i32, i32) {
    %c0_i32 = arith.constant 0 : i32
    %c0_i32_0 = arith.constant 0 : i32
    %c0_i32_1 = arith.constant 0 : i32
    return %c0_i32, %c0_i32_0 : i32, i32
  }
  func.func @transform_3(%arg0: i32, %arg1: memref<2x8xi32, #tpu.memory_space<smem>>) -> (i32, i32) {
    %c0_i32 = arith.constant 0 : i32
    %c0_i32_0 = arith.constant 0 : i32
    %c0_i32_1 = arith.constant 0 : i32
    return %c0_i32, %c0_i32_0 : i32, i32
  }
  func.func @transform_4(%arg0: i32, %arg1: memref<2x8xi32, #tpu.memory_space<smem>>) -> (i32, i32) {
    %c0_i32 = arith.constant 0 : i32
    %c0_i32_0 = arith.constant 0 : i32
    %c0_i32_1 = arith.constant 0 : i32
    return %c0_i32, %c0_i32_0 : i32, i32
  }
  func.func @transform_5(%arg0: i32, %arg1: memref<2x8xi32, #tpu.memory_space<smem>>) -> (i32, i32) {
    %c0_i32 = arith.constant 0 : i32
    %c0_i32_0 = arith.constant 0 : i32
    %c0_i32_1 = arith.constant 0 : i32
    return %c0_i32, %c0_i32_0 : i32, i32
  }
  func.func @transform_6(%arg0: i32, %arg1: memref<2x8xi32, #tpu.memory_space<smem>>) -> (i32, i32) {
    %c0_i32 = arith.constant 0 : i32
    %c0_i32_0 = arith.constant 0 : i32
    %c0_i32_1 = arith.constant 0 : i32
    return %c0_i32, %c0_i32_0 : i32, i32
  }
  func.func @transform_8(%arg0: i32, %arg1: memref<2x8xi32, #tpu.memory_space<smem>>) -> i32 {
    %c0_i32 = arith.constant 0 : i32
    %c0_i32_0 = arith.constant 0 : i32
    return %c0_i32 : i32
  }
  func.func @transform_9(%arg0: i32, %arg1: memref<2x8xi32, #tpu.memory_space<smem>>) -> (i32, i32) {
    %c0_i32 = arith.constant 0 : i32
    %c0_i32_0 = arith.constant 0 : i32
    %c0_i32_1 = arith.constant 0 : i32
    return %c0_i32, %c0_i32_0 : i32, i32
  }
}

</mosaic_0001>

<llo_original>
// kernel: dual_encoder_forward.1
$region0: #{dual_encoder_forward.1}
  #allocation0 [shape = 'u32[]', space=smem, size = 0x4, offset = 0x4, fixed_abs, tag = 'smem constant byte address 0x4 - core index']
  #allocation1 [shape = 'u32[72,128]{1,0:T(1,128)}', space=vmem, size = 0x9000, scoped, tag = 'internal scratch']
  #allocation2 [shape = 'f32[2,64]{1,0:T(2,128)}', space=vmem, size = 0x400, scoped, tag = 'scratch operand']
  #allocation3 [shape = 'f32[2,32]{1,0:T(2,128)}', space=vmem, size = 0x400, scoped, tag = 'scratch operand']
  #allocation4 [shape = 's32[2]{0}', space=sflag, size = 0x8, scoped, tag = 'scratch operand']
  #allocation5 [shape = 's32[1]{0}', space=sflag, size = 0x4, scoped, tag = 'scoped memory for dual_encoder_forward.1']
  #allocation6 [shape = 'u8[1024]{0}', space=smem, size = 0x400, scoped, tag = 'prefetched SMEM operand 0']
  #allocation7 [shape = 'f32[1]{0:T(128)S(6)}', space=smem, size = 0x200, scoped, tag = 'scoped memory for dual_encoder_forward.1']
  #allocation8 [shape = 's32[]', space=sflag, size = 0x4, offset = 0, fixed_abs, tag = 'sflag constant byte address 0x0 - dummy sync flag']
  #allocation9 [shape = 's32[]', space=sflag, size = 0x4, offset = 0, fixed_abs, tag = 'sflag constant byte address 0x0 - dummy sync flag']
  %s0 = inlined_call_operand.vmem [shape: s32[2,8], index: 0, kind: input, shape index: {}]
  %s1 = inlined_call_operand.vmem [shape: bf16[512,128], index: 1, kind: input, shape index: {}]
  %s2 = inlined_call_operand.vmem [shape: bf16[128,64], index: 2, kind: input, shape index: {}]
  %s3 = inlined_call_operand.vmem [shape: f32[1,64], index: 3, kind: input, shape index: {}]
  %s4 = inlined_call_operand.vmem [shape: bf16[64,32], index: 4, kind: input, shape index: {}]
  %s5 = inlined_call_operand.vmem [shape: f32[1,32], index: 5, kind: input, shape index: {}]
  %s6 = inlined_call_operand.vmem [shape: bf16[32,32], index: 6, kind: input, shape index: {}]
  %s7 = inlined_call_operand.vmem [shape: f32[1,32], index: 7, kind: input, shape index: {}]
  %s8 = inlined_call_operand.vmem [shape: f32[64,32], index: 8, kind: input, shape index: {}]
  %s9 = inlined_call_operand.<no memory space> [shape: f32[1], index: 9, kind: input, shape index: {}]
  %s10 = inlined_call_operand.vmem [shape: f32[2,2], index: 10, kind: output, shape index: {}]
  %s11 = sld [smem:[#allocation0]]
  $region133: #{dual_encoder_forward.1} parent=0
    _
  %s13 = ssub.s32 1, %s11
  %s14 = scalar_select 0, %s13, %s11
  %s16 = sshll.u32 %s0, 4
  %s17 = int_to_ptr.vmem [resolvable:$true] %s16
  %19 = dma.vmem_to_smem %s17, 32, [#allocation6], [#allocation5]
  %20 = sst [smem:[#allocation7]] %s9
  %22 = dma.done [#allocation5], 32
  %23 = sfence
  loop: start=0, step=1, limit=4
  $region2: #{dual_encoder_forward.1} parent=0 // loop_pre_header
    _
  $region3: #{dual_encoder_forward.1} parent=0 // loop_header
    %s25 = sphi 0, %s29
    %p26 = scmp.ge.s32.totalorder %s25, 4
    %s35 = sphi 0, %s37
    %s38 = sphi 0, %s35
    %s39 = sphi 0, %s38
    %s55 = sphi 0, %s39
    %s59 = sphi 0, %s59
    %s61 = sphi 0, %s59
    %s62 = sphi 0, %s61
    %s76 = sphi 0, %s62
    %s80 = sphi 0, %s80
    %s82 = sphi 0, %s80
    %s83 = sphi 0, %s82
    %s97 = sphi 0, %s83
    %s101 = sphi 0, %s101
    %s103 = sphi 0, %s101
    %s104 = sphi 0, %s103
    %s118 = sphi 0, %s104
    %s122 = sphi 0, %s122
    %s124 = sphi 0, %s122
    %s125 = sphi 0, %s124
    %s139 = sphi 0, %s125
    %s143 = sphi 0, %s143
    %s145 = sphi 0, %s143
    %s146 = sphi 0, %s145
    %s160 = sphi 0, %s146
    %s164 = sphi 0, %s164
    %s166 = sphi 0, %s164
    %s167 = sphi 0, %s166
    %s181 = sphi 0, %s167
    %s185 = sphi 0, %s185
    %s187 = sphi 0, %s185
    %s188 = sphi 0, %s187
    %s202 = sphi 0, %s188
    %s206 = sphi 0, %s206
    %s208 = sphi 0, %s206
    %s209 = sphi 0, %s208
    %s223 = sphi 0, %s209
  $region4: #{dual_encoder_forward.1} parent=0 // loop_header_branch
    %28 = sbr.rel (%p26) target = $region8
  $region5: #{dual_encoder_forward.1} parent=0 // loop_body
    %s30 = ssub.s32 %s25, 1
    %s31 = ssub.s32 %s25, 2
    %s32 = sadd.s32 %s25, 1
    %s33 = ssub.s32 %s25, %s32
    %p34 = scmp.eq.s32.totalorder %s33, 0
    %s36 = sadd.s32 %s35, 1
    %s37 = scalar_select %p34, %s35, %s36
    %p40 = pneg %p34
    %p41 = scmp.eq.s32.totalorder %s25, 1
    %p42 = por %p40, %p41
    %p43 = scmp.ne.s32.totalorder %s35, %s38
    %p44 = scmp.eq.s32.totalorder %s25, 0
    %p45 = por %p43, %p44
    %p46 = scmp.ne.s32.totalorder %s35, %s38
    %p47 = scmp.eq.s32.totalorder %s30, 1
    %p48 = por %p46, %p47
    %p49 = scmp.ne.s32.totalorder %s38, %s39
    %p50 = scmp.eq.s32.totalorder %s30, 0
    %p51 = por %p49, %p50
    %p52 = scmp.ne.s32.totalorder %s38, %s39
    %p53 = scmp.eq.s32.totalorder %s31, 1
    %p54 = por %p52, %p53
    %p56 = scmp.ne.s32.totalorder %s39, %s55
    %p57 = scmp.eq.s32.totalorder %s31, 0
    %p58 = por %p56, %p57
    %s60 = sadd.s32 %s59, 1
    %p63 = scmp.eq.s32.totalorder %s25, 1
    %p64 = scmp.ne.s32.totalorder %s59, %s61
    %p65 = scmp.eq.s32.totalorder %s25, 0
    %p66 = por %p64, %p65
    %p67 = scmp.ne.s32.totalorder %s59, %s61
    %p68 = scmp.eq.s32.totalorder %s30, 1
    %p69 = por %p67, %p68
    %p70 = scmp.ne.s32.totalorder %s61, %s62
    %p71 = scmp.eq.s32.totalorder %s30, 0
    %p72 = por %p70, %p71
    %p73 = scmp.ne.s32.totalorder %s61, %s62
    %p74 = scmp.eq.s32.totalorder %s31, 1
    %p75 = por %p73, %p74
    %p77 = scmp.ne.s32.totalorder %s62, %s76
    %p78 = scmp.eq.s32.totalorder %s31, 0
    %p79 = por %p77, %p78
    %s81 = sadd.s32 %s80, 1
    %p84 = scmp.eq.s32.totalorder %s25, 1
    %p85 = scmp.ne.s32.totalorder %s80, %s82
    %p86 = scmp.eq.s32.totalorder %s25, 0
    %p87 = por %p85, %p86
    %p88 = scmp.ne.s32.totalorder %s80, %s82
    %p89 = scmp.eq.s32.totalorder %s30, 1
    %p90 = por %p88, %p89
    %p91 = scmp.ne.s32.totalorder %s82, %s83
    %p92 = scmp.eq.s32.totalorder %s30, 0
    %p93 = por %p91, %p92
    %p94 = scmp.ne.s32.totalorder %s82, %s83
    %p95 = scmp.eq.s32.totalorder %s31, 1
    %p96 = por %p94, %p95
    %p98 = scmp.ne.s32.totalorder %s83, %s97
    %p99 = scmp.eq.s32.totalorder %s31, 0
    %p100 = por %p98, %p99
    %s102 = sadd.s32 %s101, 1
    %p105 = scmp.eq.s32.totalorder %s25, 1
    %p106 = scmp.ne.s32.totalorder %s101, %s103
    %p107 = scmp.eq.s32.totalorder %s25, 0
    %p108 = por %p106, %p107
    %p109 = scmp.ne.s32.totalorder %s101, %s103
    %p110 = scmp.eq.s32.totalorder %s30, 1
    %p111 = por %p109, %p110
    %p112 = scmp.ne.s32.totalorder %s103, %s104
    %p113 = scmp.eq.s32.totalorder %s30, 0
    %p114 = por %p112, %p113
    %p115 = scmp.ne.s32.totalorder %s103, %s104
    %p116 = scmp.eq.s32.totalorder %s31, 1
    %p117 = por %p115, %p116
    %p119 = scmp.ne.s32.totalorder %s104, %s118
    %p120 = scmp.eq.s32.totalorder %s31, 0
    %p121 = por %p119, %p120
    %s123 = sadd.s32 %s122, 1
    %p126 = scmp.eq.s32.totalorder %s25, 1
    %p127 = scmp.ne.s32.totalorder %s122, %s124
    %p128 = scmp.eq.s32.totalorder %s25, 0
    %p129 = por %p127, %p128
    %p130 = scmp.ne.s32.totalorder %s122, %s124
    %p131 = scmp.eq.s32.totalorder %s30, 1
    %p132 = por %p130, %p131
    %p133 = scmp.ne.s32.totalorder %s124, %s125
    %p134 = scmp.eq.s32.totalorder %s30, 0
    %p135 = por %p133, %p134
    %p136 = scmp.ne.s32.totalorder %s124, %s125
    %p137 = scmp.eq.s32.totalorder %s31, 1
    %p138 = por %p136, %p137
    %p140 = scmp.ne.s32.totalorder %s125, %s139
    %p141 = scmp.eq.s32.totalorder %s31, 0
    %p142 = por %p140, %p141
    %s144 = sadd.s32 %s143, 1
    %p147 = scmp.eq.s32.totalorder %s25, 1
    %p148 = scmp.ne.s32.totalorder %s143, %s145
    %p149 = scmp.eq.s32.totalorder %s25, 0
    %p150 = por %p148, %p149
    %p151 = scmp.ne.s32.totalorder %s143, %s145
    %p152 = scmp.eq.s32.totalorder %s30, 1
    %p153 = por %p151, %p152
    %p154 = scmp.ne.s32.totalorder %s145, %s146
    %p155 = scmp.eq.s32.totalorder %s30, 0
    %p156 = por %p154, %p155
    %p157 = scmp.ne.s32.totalorder %s145, %s146
    %p158 = scmp.eq.s32.totalorder %s31, 1
    %p159 = por %p157, %p158
    %p161 = scmp.ne.s32.totalorder %s146, %s160
    %p162 = scmp.eq.s32.totalorder %s31, 0
    %p163 = por %p161, %p162
    %s165 = sadd.s32 %s164, 1
    %p168 = scmp.eq.s32.totalorder %s25, 1
    %p169 = scmp.ne.s32.totalorder %s164, %s166
    %p170 = scmp.eq.s32.totalorder %s25, 0
    %p171 = por %p169, %p170
    %p172 = scmp.ne.s32.totalorder %s164, %s166
    %p173 = scmp.eq.s32.totalorder %s30, 1
    %p174 = por %p172, %p173
    %p175 = scmp.ne.s32.totalorder %s166, %s167
    %p176 = scmp.eq.s32.totalorder %s30, 0
    %p177 = por %p175, %p176
    %p178 = scmp.ne.s32.totalorder %s166, %s167
    %p179 = scmp.eq.s32.totalorder %s31, 1
    %p180 = por %p178, %p179
    %p182 = scmp.ne.s32.totalorder %s167, %s181
    %p183 = scmp.eq.s32.totalorder %s31, 0
    %p184 = por %p182, %p183
    %s186 = sadd.s32 %s185, 1
    %p189 = scmp.eq.s32.totalorder %s25, 1
    %p190 = scmp.ne.s32.totalorder %s185, %s187
    %p191 = scmp.eq.s32.totalorder %s25, 0
    %p192 = por %p190, %p191
    %p193 = scmp.ne.s32.totalorder %s185, %s187
    %p194 = scmp.eq.s32.totalorder %s30, 1
    %p195 = por %p193, %p194
    %p196 = scmp.ne.s32.totalorder %s187, %s188
    %p197 = scmp.eq.s32.totalorder %s30, 0
    %p198 = por %p196, %p197
    %p199 = scmp.ne.s32.totalorder %s187, %s188
    %p200 = scmp.eq.s32.totalorder %s31, 1
    %p201 = por %p199, %p200
    %p203 = scmp.ne.s32.totalorder %s188, %s202
    %p204 = scmp.eq.s32.totalorder %s31, 0
    %p205 = por %p203, %p204
    %s207 = sadd.s32 %s206, 1
    %p210 = scmp.eq.s32.totalorder %s25, 1
    %p211 = scmp.ne.s32.totalorder %s206, %s208
    %p212 = scmp.eq.s32.totalorder %s25, 0
    %p213 = por %p211, %p212
    %p214 = scmp.ne.s32.totalorder %s206, %s208
    %p215 = scmp.eq.s32.totalorder %s30, 1
    %p216 = por %p214, %p215
    %p217 = scmp.ne.s32.totalorder %s208, %s209
    %p218 = scmp.eq.s32.totalorder %s30, 0
    %p219 = por %p217, %p218
    %p220 = scmp.ne.s32.totalorder %s208, %s209
    %p221 = scmp.eq.s32.totalorder %s31, 1
    %p222 = por %p220, %p221
    %p224 = scmp.ne.s32.totalorder %s209, %s223
    %p225 = scmp.eq.s32.totalorder %s31, 0
    %p226 = por %p224, %p225
    %p227 = scmp.le.s32.totalorder 1, %s25
    %p228 = scmp.lt.s32.totalorder %s25, 3
    %p229 = pnand %p227, %p228
    %p230 = pneg %p229
    // Predicated region
    $region9: #{dual_encoder_forward.1} parent=5 // pred_check
      _
    $region10: #{dual_encoder_forward.1} parent=5 // pred_check_branch
      %232 = sbr.rel (%p229) target = $region12
    $region11: #{dual_encoder_forward.1} parent=5 // pred_region
      %s233 = ssub.s32 %s25, 1
      // Predicated region
      $region13: #{dual_encoder_forward.1} parent=11 // pred_check
        %p234 = pneg %p72
      $region14: #{dual_encoder_forward.1} parent=11 // pred_check_branch
        %236 = sbr.rel (%p234) target = $region16
      $region15: #{dual_encoder_forward.1} parent=11 // pred_region
        _
      $region16: #{dual_encoder_forward.1} parent=11 // pred_fallthru
        _
      // Predicated region
      $region17: #{dual_encoder_forward.1} parent=11 // pred_check
        %p237 = pneg %p93
      $region18: #{dual_encoder_forward.1} parent=11 // pred_check_branch
        %239 = sbr.rel (%p237) target = $region20
      $region19: #{dual_encoder_forward.1} parent=11 // pred_region
        _
      $region20: #{dual_encoder_forward.1} parent=11 // pred_fallthru
        _
      // Predicated region
      $region21: #{dual_encoder_forward.1} parent=11 // pred_check
        %p240 = pneg %p114
      $region22: #{dual_encoder_forward.1} parent=11 // pred_check_branch
        %242 = sbr.rel (%p240) target = $region24
      $region23: #{dual_encoder_forward.1} parent=11 // pred_region
        _
      $region24: #{dual_encoder_forward.1} parent=11 // pred_fallthru
        _
      // Predicated region
      $region25: #{dual_encoder_forward.1} parent=11 // pred_check
        %p243 = pneg %p135
      $region26: #{dual_encoder_forward.1} parent=11 // pred_check_branch
        %245 = sbr.rel (%p243) target = $region28
      $region27: #{dual_encoder_forward.1} parent=11 // pred_region
        _
      $region28: #{dual_encoder_forward.1} parent=11 // pred_fallthru
        _
      // Predicated region
      $region29: #{dual_encoder_forward.1} parent=11 // pred_check
        %p246 = pneg %p156
      $region30: #{dual_encoder_forward.1} parent=11 // pred_check_branch
        %248 = sbr.rel (%p246) target = $region32
      $region31: #{dual_encoder_forward.1} parent=11 // pred_region
        _
      $region32: #{dual_encoder_forward.1} parent=11 // pred_fallthru
        _
      // Predicated region
      $region33: #{dual_encoder_forward.1} parent=11 // pred_check
        %p249 = pneg %p177
      $region34: #{dual_encoder_forward.1} parent=11 // pred_check_branch
        %251 = sbr.rel (%p249) target = $region36
      $region35: #{dual_encoder_forward.1} parent=11 // pred_region
        _
      $region36: #{dual_encoder_forward.1} parent=11 // pred_fallthru
        _
      // Predicated region
      $region37: #{dual_encoder_forward.1} parent=11 // pred_check
        %p252 = pneg %p198
      $region38: #{dual_encoder_forward.1} parent=11 // pred_check_branch
        %254 = sbr.rel (%p252) target = $region40
      $region39: #{dual_encoder_forward.1} parent=11 // pred_region
        _
      $region40: #{dual_encoder_forward.1} parent=11 // pred_fallthru
        _
    $region12: #{dual_encoder_forward.1} parent=5 // pred_fallthru
      _
    %p255 = scmp.lt.s32.totalorder %s25, 2
    // Predicated region
    $region41: #{dual_encoder_forward.1} parent=5 // pred_check
      %p256 = pneg %p255
    $region42: #{dual_encoder_forward.1} parent=5 // pred_check_branch
      %258 = sbr.rel (%p256) target = $region44
    $region43: #{dual_encoder_forward.1} parent=5 // pred_region
      // Predicated region
      $region45: #{dual_encoder_forward.1} parent=43 // pred_check
        %p259 = pneg %p45
      $region46: #{dual_encoder_forward.1} parent=43 // pred_check_branch
        %261 = sbr.rel (%p259) target = $region48
      $region47: #{dual_encoder_forward.1} parent=43 // pred_region
        %s262 = smul.u32 32, %s25
        %p263 = scmp.lt.s32.totalorder %s262, 63
        %s264 = scalar_select %p263, %s262, 63
        %s265 = smul.addr %s264, 4
        %s266 = scalar_lea.vmem %s1, %s265
        %s267 = smul.u32 32, %s25
      $region48: #{dual_encoder_forward.1} parent=43 // pred_fallthru
        _
    $region44: #{dual_encoder_forward.1} parent=5 // pred_fallthru
      _
    %p268 = scmp.le.s32.totalorder 1, %s25
    %p269 = scmp.lt.s32.totalorder %s25, 3
    %p270 = pnand %p268, %p269
    %p271 = pneg %p270
    // Predicated region
    $region49: #{dual_encoder_forward.1} parent=5 // pred_check
      _
    $region50: #{dual_encoder_forward.1} parent=5 // pred_check_branch
      %273 = sbr.rel (%p270) target = $region52
    $region51: #{dual_encoder_forward.1} parent=5 // pred_region
      %s274 = ssub.s32 %s25, 1
      %s275 = smul.u32 32, %s30
      %p276 = scmp.lt.s32.totalorder %s275, 63
      %s277 = scalar_select %p276, %s275, 63
      %s278 = smul.addr %s277, 4
      %s279 = scalar_lea.vmem %s1, %s278
      %p280 = pneg %p51
      %p281 = pneg %p48
      %p282 = pneg %p72
      %p283 = pneg %p69
      %p284 = pneg %p93
      %p285 = pneg %p90
      %p286 = pneg %p114
      %p287 = pneg %p111
      %p288 = pneg %p135
      %p289 = pneg %p132
      %p290 = pneg %p156
      %p291 = pneg %p153
      %p292 = pneg %p177
      %p293 = pneg %p174
      %p294 = pneg %p198
      %p295 = pneg %p195
      %p296 = pneg %p219
      %p297 = pneg %p216
      %s298 = smul.u32 32, %s30
      %p299 = scmp.lt.s32.totalorder %s298, 63
      %s300 = scalar_select %p299, %s298, 63
      %s301 = smul.addr %s300, 4
      %s302 = scalar_lea.vmem %s1, %s301
      %s303 = smul.u32 32, %s30
      %p305 = scmp.eq.s32.totalorder %s30, 0
      // Predicated region
      $region53: #{dual_encoder_forward.1} parent=51 // pred_check
        %p306 = pneg %p305
      $region54: #{dual_encoder_forward.1} parent=51 // pred_check_branch
        %308 = sbr.rel (%p306) target = $region56
      $region55: #{dual_encoder_forward.1} parent=51 // pred_region
        %s309 = sld [smem:[#allocation6 + $0x7]]
        %s310 = scalar_lea.vmem %s8, %s309
        // Predicated region
        $region57: #{dual_encoder_forward.1} parent=55 // pred_check
          _
        $region58: #{dual_encoder_forward.1} parent=55 // pred_check_branch
          %312 = sbr.rel target = $region60
        $region59: #{dual_encoder_forward.1} parent=55 // pred_region
          // Predicated region
          $region72: #{dual_encoder_forward.1} parent=59 // pred_check
            _
          $region73: #{dual_encoder_forward.1} parent=59 // pred_check_branch
            %328 = sbr.rel (0) target = $region75
          $region74: #{dual_encoder_forward.1} parent=59 // pred_region
            %s330 = ssub.s32 2, 1
            loop: start=0, step=1, limit=1
            $region76: #{dual_encoder_forward.1} parent=74 // loop_pre_header
              _
            $region77: #{dual_encoder_forward.1} parent=74 // loop_header
              %s332 = sphi 0, %s336
              %p333 = scmp.ge.s32.totalorder %s332, 1
              %s337 = sphi %s310, %s310
              %s338 = sphi [#allocation3], [#allocation3]
            $region78: #{dual_encoder_forward.1} parent=74 // loop_header_branch
              %335 = sbr.rel (%p333) target = $region82
            $region79: #{dual_encoder_forward.1} parent=74 // loop_body
              %v339 = vld [vmem:[%s337] sm:%s330]
              %340 = vst [vmem:[%s338] sm:%s330] %v339
            $region80: #{dual_encoder_forward.1} parent=74 // loop_footer
              %s336 = sadd.s32 1, %s332
            $region81: #{dual_encoder_forward.1} parent=74 // loop_footer_branch
              %331 = sbr.rel target = $region77
            $region82: #{dual_encoder_forward.1} parent=74 // loop_exit
              _
          $region75: #{dual_encoder_forward.1} parent=59 // pred_fallthru
            _
        $region60: #{dual_encoder_forward.1} parent=55 // pred_fallthru
          _
        // Predicated region
        $region61: #{dual_encoder_forward.1} parent=55 // pred_check
          _
        $region62: #{dual_encoder_forward.1} parent=55 // pred_check_branch
          %314 = sbr.rel (0) target = $region64
        $region63: #{dual_encoder_forward.1} parent=55 // pred_region
          %s316 = ssub.s32 2, 1
          loop: start=0, step=1, limit=1
          $region65: #{dual_encoder_forward.1} parent=63 // loop_pre_header
            _
          $region66: #{dual_encoder_forward.1} parent=63 // loop_header
            %s318 = sphi 0, %s322
            %p319 = scmp.ge.s32.totalorder %s318, 1
            %s323 = sphi %s310, %s310
            %s324 = sphi [#allocation3], [#allocation3]
          $region67: #{dual_encoder_forward.1} parent=63 // loop_header_branch
            %321 = sbr.rel (%p319) target = $region71
          $region68: #{dual_encoder_forward.1} parent=63 // loop_body
            %v325 = vld [vmem:[%s323] sm:%s316]
            %326 = vst [vmem:[%s324] sm:%s316] %v325
          $region69: #{dual_encoder_forward.1} parent=63 // loop_footer
            %s322 = sadd.s32 1, %s318
          $region70: #{dual_encoder_forward.1} parent=63 // loop_footer_branch
            %317 = sbr.rel target = $region66
          $region71: #{dual_encoder_forward.1} parent=63 // loop_exit
            _
        $region64: #{dual_encoder_forward.1} parent=55 // pred_fallthru
          _
        // Predicated region
        $region83: #{dual_encoder_forward.1} parent=55 // pred_check
          _
        $region84: #{dual_encoder_forward.1} parent=55 // pred_check_branch
          %343 = sbr.rel (0) target = $region86
        $region85: #{dual_encoder_forward.1} parent=55 // pred_region
          %344 = vsyncadd [#allocation4], 16
        $region86: #{dual_encoder_forward.1} parent=55 // pred_fallthru
          _
        %s345 = sld [smem:[#allocation6 + $0x87]]
        %s346 = scalar_lea.vmem %s8, %s345
        %s347 = scalar_lea.vmem [#allocation3], 1
        %s348 = scalar_lea.sflag [#allocation4], 1
        // Predicated region
        $region87: #{dual_encoder_forward.1} parent=55 // pred_check
          _
        $region88: #{dual_encoder_forward.1} parent=55 // pred_check_branch
          %350 = sbr.rel target = $region90
        $region89: #{dual_encoder_forward.1} parent=55 // pred_region
          // Predicated region
          $region102: #{dual_encoder_forward.1} parent=89 // pred_check
            _
          $region103: #{dual_encoder_forward.1} parent=89 // pred_check_branch
            %366 = sbr.rel (0) target = $region105
          $region104: #{dual_encoder_forward.1} parent=89 // pred_region
            %s368 = ssub.s32 2, 1
            loop: start=0, step=1, limit=1
            $region106: #{dual_encoder_forward.1} parent=104 // loop_pre_header
              _
            $region107: #{dual_encoder_forward.1} parent=104 // loop_header
              %s370 = sphi 0, %s374
              %p371 = scmp.ge.s32.totalorder %s370, 1
              %s375 = sphi %s346, %s346
              %s376 = sphi %s347, %s347
            $region108: #{dual_encoder_forward.1} parent=104 // loop_header_branch
              %373 = sbr.rel (%p371) target = $region112
            $region109: #{dual_encoder_forward.1} parent=104 // loop_body
              %v377 = vld [vmem:[%s375] sm:%s368]
              %378 = vst [vmem:[%s376] sm:%s368] %v377
            $region110: #{dual_encoder_forward.1} parent=104 // loop_footer
              %s374 = sadd.s32 1, %s370
            $region111: #{dual_encoder_forward.1} parent=104 // loop_footer_branch
              %369 = sbr.rel target = $region107
            $region112: #{dual_encoder_forward.1} parent=104 // loop_exit
              _
          $region105: #{dual_encoder_forward.1} parent=89 // pred_fallthru
            _
        $region90: #{dual_encoder_forward.1} parent=55 // pred_fallthru
          _
        // Predicated region
        $region91: #{dual_encoder_forward.1} parent=55 // pred_check
          _
        $region92: #{dual_encoder_forward.1} parent=55 // pred_check_branch
          %352 = sbr.rel (0) target = $region94
        $region93: #{dual_encoder_forward.1} parent=55 // pred_region
          %s354 = ssub.s32 2, 1
          loop: start=0, step=1, limit=1
          $region95: #{dual_encoder_forward.1} parent=93 // loop_pre_header
            _
          $region96: #{dual_encoder_forward.1} parent=93 // loop_header
            %s356 = sphi 0, %s360
            %p357 = scmp.ge.s32.totalorder %s356, 1
            %s361 = sphi %s346, %s346
            %s362 = sphi %s347, %s347
          $region97: #{dual_encoder_forward.1} parent=93 // loop_header_branch
            %359 = sbr.rel (%p357) target = $region101
          $region98: #{dual_encoder_forward.1} parent=93 // loop_body
            %v363 = vld [vmem:[%s361] sm:%s354]
            %364 = vst [vmem:[%s362] sm:%s354] %v363
          $region99: #{dual_encoder_forward.1} parent=93 // loop_footer
            %s360 = sadd.s32 1, %s356
          $region100: #{dual_encoder_forward.1} parent=93 // loop_footer_branch
            %355 = sbr.rel target = $region96
          $region101: #{dual_encoder_forward.1} parent=93 // loop_exit
            _
        $region94: #{dual_encoder_forward.1} parent=55 // pred_fallthru
          _
        // Predicated region
        $region113: #{dual_encoder_forward.1} parent=55 // pred_check
          _
        $region114: #{dual_encoder_forward.1} parent=55 // pred_check_branch
          %381 = sbr.rel (0) target = $region116
        $region115: #{dual_encoder_forward.1} parent=55 // pred_region
          %382 = vsyncadd %s348, 16
        $region116: #{dual_encoder_forward.1} parent=55 // pred_fallthru
          _
      $region56: #{dual_encoder_forward.1} parent=51 // pred_fallthru
        _
      %v383 = vld [vmem:[%s302] sm:$0xf]
      %v384 = vld [vmem:[%s302 + $0x4] sm:$0xf]
      %v385 = vld [vmem:[%s302 + $0x8] sm:$0xf]
      %v386 = vld [vmem:[%s302 + $0xc] sm:$0xf]
      %v387 = vld [vmem:[%s302 + $0x10] sm:$0xf]
      %v388 = vld [vmem:[%s302 + $0x14] sm:$0xf]
      %v389 = vld [vmem:[%s302 + $0x18] sm:$0xf]
      %v390 = vld [vmem:[%s302 + $0x1c] sm:$0xf]
      %v391 = vld [vmem:[%s302 + $0x20] sm:$0xf]
      %v392 = vld [vmem:[%s302 + $0x24] sm:$0xf]
      %v393 = vld [vmem:[%s302 + $0x28] sm:$0xf]
      %v394 = vld [vmem:[%s302 + $0x2c] sm:$0xf]
      %v395 = vld [vmem:[%s302 + $0x30] sm:$0xf]
      %v396 = vld [vmem:[%s302 + $0x34] sm:$0xf]
      %v397 = vld [vmem:[%s302 + $0x38] sm:$0xf]
      %v398 = vld [vmem:[%s302 + $0x3c] sm:$0xf]
      %v399 = vld [vmem:[%s302 + $0x40] sm:$0xf]
      %v400 = vld [vmem:[%s302 + $0x44] sm:$0xf]
      %v401 = vld [vmem:[%s302 + $0x48] sm:$0xf]
      %v402 = vld [vmem:[%s302 + $0x4c] sm:$0xf]
      %v403 = vld [vmem:[%s302 + $0x50] sm:$0xf]
      %v404 = vld [vmem:[%s302 + $0x54] sm:$0xf]
      %v405 = vld [vmem:[%s302 + $0x58] sm:$0xf]
      %v406 = vld [vmem:[%s302 + $0x5c] sm:$0xf]
      %v407 = vld [vmem:[%s302 + $0x60] sm:$0xf]
      %v408 = vld [vmem:[%s302 + $0x64] sm:$0xf]
      %v409 = vld [vmem:[%s302 + $0x68] sm:$0xf]
      %v410 = vld [vmem:[%s302 + $0x6c] sm:$0xf]
      %v411 = vld [vmem:[%s302 + $0x70] sm:$0xf]
      %v412 = vld [vmem:[%s302 + $0x74] sm:$0xf]
      %v413 = vld [vmem:[%s302 + $0x78] sm:$0xf]
      %v414 = vld [vmem:[%s302 + $0x7c] sm:$0xf]
      %v415 = vld [vmem:[%s2] sm:$0xf]
      %v416 = vld [vmem:[%s2 + $0x4] sm:$0xf]
      %v417 = vld [vmem:[%s2 + $0x8] sm:$0xf]
      %v418 = vld [vmem:[%s2 + $0xc] sm:$0xf]
      %v419 = vld [vmem:[%s2 + $0x10] sm:$0xf]
      %v420 = vld [vmem:[%s2 + $0x14] sm:$0xf]
      %v421 = vld [vmem:[%s2 + $0x18] sm:$0xf]
      %v422 = vld [vmem:[%s2 + $0x1c] sm:$0xf]
      %v423 = vld [vmem:[%s2 + $0x20] sm:$0xf]
      %v424 = vld [vmem:[%s2 + $0x24] sm:$0xf]
      %v425 = vld [vmem:[%s2 + $0x28] sm:$0xf]
      %v426 = vld [vmem:[%s2 + $0x2c] sm:$0xf]
      %v427 = vld [vmem:[%s2 + $0x30] sm:$0xf]
      %v428 = vld [vmem:[%s2 + $0x34] sm:$0xf]
      %v429 = vld [vmem:[%s2 + $0x38] sm:$0xf]
      %v430 = vld [vmem:[%s2 + $0x3c] sm:$0xf]
      %v431 = vld [vmem:[%s3] sm:$0x1]
      %v433 = vperm.slane %v431, 0
      %v467 = vunpack.c.l.b16 %v383
      %v468 = vunpack.c.l.b16 %v384
      %v469 = vunpack.c.l.b16 %v385
      %v470 = vunpack.c.l.b16 %v386
      %v471 = vunpack.c.l.b16 %v387
      %v472 = vunpack.c.l.b16 %v388
      %v473 = vunpack.c.l.b16 %v389
      %v474 = vunpack.c.l.b16 %v390
      %v475 = vunpack.c.l.b16 %v391
      %v476 = vunpack.c.l.b16 %v392
      %v477 = vunpack.c.l.b16 %v393
      %v478 = vunpack.c.l.b16 %v394
      %v479 = vunpack.c.l.b16 %v395
      %v480 = vunpack.c.l.b16 %v396
      %v481 = vunpack.c.l.b16 %v397
      %v482 = vunpack.c.l.b16 %v398
      %v483 = vunpack.c.l.b16 %v399
      %v484 = vunpack.c.l.b16 %v400
      %v485 = vunpack.c.l.b16 %v401
      %v486 = vunpack.c.l.b16 %v402
      %v487 = vunpack.c.l.b16 %v403
      %v488 = vunpack.c.l.b16 %v404
      %v489 = vunpack.c.l.b16 %v405
      %v490 = vunpack.c.l.b16 %v406
      %v491 = vunpack.c.l.b16 %v407
      %v492 = vunpack.c.l.b16 %v408
      %v493 = vunpack.c.l.b16 %v409
      %v494 = vunpack.c.l.b16 %v410
      %v495 = vunpack.c.l.b16 %v411
      %v496 = vunpack.c.l.b16 %v412
      %v497 = vunpack.c.l.b16 %v413
      %v498 = vunpack.c.l.b16 %v414
      %v499 = vpack.c.b16 %v468, %v467
      %v500 = vpack.c.b16 %v470, %v469
      %v501 = vpack.c.b16 %v472, %v471
      %v502 = vpack.c.b16 %v474, %v473
      %v503 = vpack.c.b16 %v476, %v475
      %v504 = vpack.c.b16 %v478, %v477
      %v505 = vpack.c.b16 %v480, %v479
      %v506 = vpack.c.b16 %v482, %v481
      %v507 = vpack.c.b16 %v484, %v483
      %v508 = vpack.c.b16 %v486, %v485
      %v509 = vpack.c.b16 %v488, %v487
      %v510 = vpack.c.b16 %v490, %v489
      %v511 = vpack.c.b16 %v492, %v491
      %v512 = vpack.c.b16 %v494, %v493
      %v513 = vpack.c.b16 %v496, %v495
      %v514 = vpack.c.b16 %v498, %v497
      %v547 = vunpack.c.l.b16 %v415
      %v548 = vunpack.c.l.b16 %v416
      %v549 = vunpack.c.l.b16 %v417
      %v550 = vunpack.c.l.b16 %v418
      %v551 = vunpack.c.l.b16 %v419
      %v552 = vunpack.c.l.b16 %v420
      %v553 = vunpack.c.l.b16 %v421
      %v554 = vunpack.c.l.b16 %v422
      %v555 = vunpack.c.l.b16 %v423
      %v556 = vunpack.c.l.b16 %v424
      %v557 = vunpack.c.l.b16 %v425
      %v558 = vunpack.c.l.b16 %v426
      %v559 = vunpack.c.l.b16 %v427
      %v560 = vunpack.c.l.b16 %v428
      %v561 = vunpack.c.l.b16 %v429
      %v562 = vunpack.c.l.b16 %v430
      %v563 = vpack.c.b16 %v548, %v547
      %v564 = vpack.c.b16 %v550, %v549
      %v565 = vpack.c.b16 %v552, %v551
      %v566 = vpack.c.b16 %v554, %v553
      %v567 = vpack.c.b16 %v556, %v555
      %v568 = vpack.c.b16 %v558, %v557
      %v569 = vpack.c.b16 %v560, %v559
      %v570 = vpack.c.b16 %v562, %v561
      %579 = vmatpush.bf16.msra.mxu0 %v570
      %580 = vmatpush.bf16.msra.mxu0 %v569
      %581 = vmatpush.bf16.msra.mxu0 %v568
      %582 = vmatpush.bf16.msra.mxu0 %v567
      %583 = vmatpush.bf16.msra.mxu0 %v566
      %584 = vmatpush.bf16.msra.mxu0 %v565
      %585 = vmatpush.bf16.msra.mxu0 %v564
      %586 = vmatpush.bf16.msra.mxu0 %v563
      %587 = vmatmul.bf16.gmra.mxu0 %v499
      %v588 = vpop.f32.mrf.mxu0
      %v589 = vadd.f32 %v433, %v588
      %v590 = vpop.f32.mrf.mxu0
      %v591 = vadd.f32 %v433, %v590
      %592 = vmatmul.bf16.gmra.mxu0 %v500
      %v593 = vpop.f32.mrf.mxu0
      %v594 = vadd.f32 %v433, %v593
      %v595 = vpop.f32.mrf.mxu0
      %v596 = vadd.f32 %v433, %v595
      %597 = vmatmul.bf16.gmra.mxu0 %v501
      %v598 = vpop.f32.mrf.mxu0
      %v599 = vadd.f32 %v433, %v598
      %v600 = vpop.f32.mrf.mxu0
      %v601 = vadd.f32 %v433, %v600
      %602 = vmatmul.bf16.gmra.mxu0 %v502
      %v603 = vpop.f32.mrf.mxu0
      %v604 = vadd.f32 %v433, %v603
      %v605 = vpop.f32.mrf.mxu0
      %v606 = vadd.f32 %v433, %v605
      %607 = vmatmul.bf16.gmra.mxu0 %v503
      %v608 = vpop.f32.mrf.mxu0
      %v609 = vadd.f32 %v433, %v608
      %v610 = vpop.f32.mrf.mxu0
      %v611 = vadd.f32 %v433, %v610
      %612 = vmatmul.bf16.gmra.mxu0 %v504
      %v613 = vpop.f32.mrf.mxu0
      %v614 = vadd.f32 %v433, %v613
      %v615 = vpop.f32.mrf.mxu0
      %v616 = vadd.f32 %v433, %v615
      %617 = vmatmul.bf16.gmra.mxu0 %v505
      %v618 = vpop.f32.mrf.mxu0
      %v619 = vadd.f32 %v433, %v618
      %v620 = vpop.f32.mrf.mxu0
      %v621 = vadd.f32 %v433, %v620
      %622 = vmatmul.bf16.gmra.mxu0 %v506
      %v623 = vpop.f32.mrf.mxu0
      %v624 = vadd.f32 %v433, %v623
      %v625 = vpop.f32.mrf.mxu0
      %v626 = vadd.f32 %v433, %v625
      %627 = vmatmul.bf16.gmra.mxu0 %v507
      %v628 = vpop.f32.mrf.mxu0
      %v629 = vadd.f32 %v433, %v628
      %v630 = vpop.f32.mrf.mxu0
      %v631 = vadd.f32 %v433, %v630
      %632 = vmatmul.bf16.gmra.mxu0 %v508
      %v633 = vpop.f32.mrf.mxu0
      %v634 = vadd.f32 %v433, %v633
      %v635 = vpop.f32.mrf.mxu0
      %v636 = vadd.f32 %v433, %v635
      %637 = vmatmul.bf16.gmra.mxu0 %v509
      %v638 = vpop.f32.mrf.mxu0
      %v639 = vadd.f32 %v433, %v638
      %v640 = vpop.f32.mrf.mxu0
      %v641 = vadd.f32 %v433, %v640
      %642 = vmatmul.bf16.gmra.mxu0 %v510
      %v643 = vpop.f32.mrf.mxu0
      %v644 = vadd.f32 %v433, %v643
      %v645 = vpop.f32.mrf.mxu0
      %v646 = vadd.f32 %v433, %v645
      %647 = vmatmul.bf16.gmra.mxu0 %v511
      %v648 = vpop.f32.mrf.mxu0
      %v649 = vadd.f32 %v433, %v648
      %v650 = vpop.f32.mrf.mxu0
      %v651 = vadd.f32 %v433, %v650
      %652 = vmatmul.bf16.gmra.mxu0 %v512
      %v653 = vpop.f32.mrf.mxu0
      %v654 = vadd.f32 %v433, %v653
      %v655 = vpop.f32.mrf.mxu0
      %v656 = vadd.f32 %v433, %v655
      %657 = vmatmul.bf16.gmra.mxu0 %v513
      %v658 = vpop.f32.mrf.mxu0
      %v659 = vadd.f32 %v433, %v658
      %v660 = vpop.f32.mrf.mxu0
      %v661 = vadd.f32 %v433, %v660
      %662 = vmatmul.bf16.gmra.mxu0 %v514
      %v663 = vpop.f32.mrf.mxu0
      %v664 = vadd.f32 %v433, %v663
      %v665 = vpop.f32.mrf.mxu0
      %v666 = vadd.f32 %v433, %v665
      %667 = vdwg.mxu0
      %v668 = vmax.f32 %v589, 0.0
      %v669 = vmax.f32 %v591, 0.0
      %v670 = vmax.f32 %v594, 0.0
      %v671 = vmax.f32 %v596, 0.0
      %v672 = vmax.f32 %v599, 0.0
      %v673 = vmax.f32 %v601, 0.0
      %v674 = vmax.f32 %v604, 0.0
      %v675 = vmax.f32 %v606, 0.0
      %v676 = vmax.f32 %v609, 0.0
      %v677 = vmax.f32 %v611, 0.0
      %v678 = vmax.f32 %v614, 0.0
      %v679 = vmax.f32 %v616, 0.0
      %v680 = vmax.f32 %v619, 0.0
      %v681 = vmax.f32 %v621, 0.0
      %v682 = vmax.f32 %v624, 0.0
      %v683 = vmax.f32 %v626, 0.0
      %v684 = vmax.f32 %v629, 0.0
      %v685 = vmax.f32 %v631, 0.0
      %v686 = vmax.f32 %v634, 0.0
      %v687 = vmax.f32 %v636, 0.0
      %v688 = vmax.f32 %v639, 0.0
      %v689 = vmax.f32 %v641, 0.0
      %v690 = vmax.f32 %v644, 0.0
      %v691 = vmax.f32 %v646, 0.0
      %v692 = vmax.f32 %v649, 0.0
      %v693 = vmax.f32 %v651, 0.0
      %v694 = vmax.f32 %v654, 0.0
      %v695 = vmax.f32 %v656, 0.0
      %v696 = vmax.f32 %v659, 0.0
      %v697 = vmax.f32 %v661, 0.0
      %v698 = vmax.f32 %v664, 0.0
      %v699 = vmax.f32 %v666, 0.0
      %vm700 = vcmask 523264
      %v701 = vsel %vm700, %v668, 0.0
      %v702 = vsel %vm700, %v669, 0.0
      %v703 = vadd.f32 %v701, %v702
      %v704 = vsel %vm700, %v670, 0.0
      %v705 = vadd.f32 %v703, %v704
      %v706 = vsel %vm700, %v671, 0.0
      %v707 = vadd.f32 %v705, %v706
      %v708 = vsel %vm700, %v672, 0.0
      %v709 = vadd.f32 %v707, %v708
      %v710 = vsel %vm700, %v673, 0.0
      %v711 = vadd.f32 %v709, %v710
      %v712 = vsel %vm700, %v674, 0.0
      %v713 = vadd.f32 %v711, %v712
      %v714 = vsel %vm700, %v675, 0.0
      %v715 = vadd.f32 %v713, %v714
      %v716 = vsel %vm700, %v676, 0.0
      %v717 = vadd.f32 %v715, %v716
      %v718 = vsel %vm700, %v677, 0.0
      %v719 = vadd.f32 %v717, %v718
      %v720 = vsel %vm700, %v678, 0.0
      %v721 = vadd.f32 %v719, %v720
      %v722 = vsel %vm700, %v679, 0.0
      %v723 = vadd.f32 %v721, %v722
      %v724 = vsel %vm700, %v680, 0.0
      %v725 = vadd.f32 %v723, %v724
      %v726 = vsel %vm700, %v681, 0.0
      %v727 = vadd.f32 %v725, %v726
      %v728 = vsel %vm700, %v682, 0.0
      %v729 = vadd.f32 %v727, %v728
      %v730 = vsel %vm700, %v683, 0.0
      %v731 = vadd.f32 %v729, %v730
      %v732 = vsel %vm700, %v684, 0.0
      %v733 = vadd.f32 %v731, %v732
      %v734 = vsel %vm700, %v685, 0.0
      %v735 = vadd.f32 %v733, %v734
      %v736 = vsel %vm700, %v686, 0.0
      %v737 = vadd.f32 %v735, %v736
      %v738 = vsel %vm700, %v687, 0.0
      %v739 = vadd.f32 %v737, %v738
      %v740 = vsel %vm700, %v688, 0.0
      %v741 = vadd.f32 %v739, %v740
      %v742 = vsel %vm700, %v689, 0.0
      %v743 = vadd.f32 %v741, %v742
      %v744 = vsel %vm700, %v690, 0.0
      %v745 = vadd.f32 %v743, %v744
      %v746 = vsel %vm700, %v691, 0.0
      %v747 = vadd.f32 %v745, %v746
      %v748 = vsel %vm700, %v692, 0.0
      %v749 = vadd.f32 %v747, %v748
      %v750 = vsel %vm700, %v693, 0.0
      %v751 = vadd.f32 %v749, %v750
      %v752 = vsel %vm700, %v694, 0.0
      %v753 = vadd.f32 %v751, %v752
      %v754 = vsel %vm700, %v695, 0.0
      %v755 = vadd.f32 %v753, %v754
      %v756 = vsel %vm700, %v696, 0.0
      %v757 = vadd.f32 %v755, %v756
      %v758 = vsel %vm700, %v697, 0.0
      %v759 = vadd.f32 %v757, %v758
      %v760 = vsel %vm700, %v698, 0.0
      %v761 = vadd.f32 %v759, %v760
      %v762 = vsel %vm700, %v699, 0.0
      %v763 = vadd.f32 %v761, %v762
      %v764 = vrot.slane %v763, 4
      %v765 = vadd.f32 %v763, %v764
      %v766 = vrot.slane %v765, 2
      %v767 = vadd.f32 %v765, %v766
      %v768 = vrot.slane %v767, 1
      %v769 = vadd.f32 %v767, %v768
      %v770 = vmul.f32 %v769, 0.00390625
      %s771 = scalar_lea.vmem [#allocation2], %s30
      %vm772 = vcmask 516096
      %773 = vst.msk [vmem:[%s771] sm:$0x1] %vm772, %v770
      %p774 = scmp.eq.s32.totalorder %s30, 1
      // Predicated region
      $region117: #{dual_encoder_forward.1} parent=51 // pred_check
        %p775 = pneg %p774
      $region118: #{dual_encoder_forward.1} parent=51 // pred_check_branch
        %777 = sbr.rel (%p775) target = $region120
      $region119: #{dual_encoder_forward.1} parent=51 // pred_region
        %s778 = sld [smem:[#allocation6 + $0x7]]
        %s779 = smul.u32 1, 1
        %s780 = sshll.u32 %s779, 4
        %781 = dma.done [#allocation4], %s780
        %s782 = sld [smem:[#allocation6 + $0x87]]
        %s783 = scalar_lea.sflag [#allocation4], 1
        %s784 = sshll.u32 %s779, 4
        %785 = dma.done %s783, %s784
        %v786 = vld [vmem:[#allocation2] sm:$0x3]
        %v787 = vld [vmem:[#allocation3] sm:$0x3]
        %v788 = vpack.c.bf16 %v786, %v786
        %v789 = vld [vmem:[%s4] sm:$0xf]
        %v790 = vld [vmem:[%s4 + $0x4] sm:$0xf]
        %v791 = vld [vmem:[%s4 + $0x8] sm:$0xf]
        %v792 = vld [vmem:[%s4 + $0xc] sm:$0xf]
        %v793 = vld [vmem:[%s4 + $0x10] sm:$0xf]
        %v794 = vld [vmem:[%s4 + $0x14] sm:$0xf]
        %v795 = vld [vmem:[%s4 + $0x18] sm:$0xf]
        %v796 = vld [vmem:[%s4 + $0x1c] sm:$0xf]
        %v797 = vld [vmem:[%s5] sm:$0x1]
        %v799 = vperm.slane %v797, 0
        %v809 = vunpack.c.l.b16 %v789
        %v810 = vunpack.c.l.b16 %v790
        %v811 = vunpack.c.l.b16 %v791
        %v812 = vunpack.c.l.b16 %v792
        %v813 = vunpack.c.l.b16 %v793
        %v814 = vunpack.c.l.b16 %v794
        %v815 = vunpack.c.l.b16 %v795
        %v816 = vunpack.c.l.b16 %v796
        %v817 = vpack.c.b16 %v810, %v809
        %v818 = vpack.c.b16 %v812, %v811
        %v819 = vpack.c.b16 %v814, %v813
        %v820 = vpack.c.b16 %v816, %v815
        %v826 = vsel %vm700, %v788, 0
        %828 = vmatpush.bf16.msra.mxu0 0
        %829 = vmatpush.bf16.msra.mxu0 0
        %830 = vmatpush.bf16.msra.mxu0 0
        %831 = vmatpush.bf16.msra.mxu0 0
        %832 = vmatpush.bf16.msra.mxu0 %v820
        %833 = vmatpush.bf16.msra.mxu0 %v819
        %834 = vmatpush.bf16.msra.mxu0 %v818
        %835 = vmatpush.bf16.msra.mxu0 %v817
        %836 = vmatmul.bf16.gmra.mxu0 %v826
        %v837 = vpop.f32.mrf.mxu0
        %v838 = vadd.f32 %v799, %v837
        %v839 = vpop.f32.mrf.mxu0
        %840 = vdwg.mxu0
        %v841 = vpack.c.bf16 %v787, %v787
        %v842 = vld [vmem:[%s6] sm:$0xf]
        %v843 = vld [vmem:[%s6 + $0x4] sm:$0xf]
        %v844 = vld [vmem:[%s6 + $0x8] sm:$0xf]
        %v845 = vld [vmem:[%s6 + $0xc] sm:$0xf]
        %v846 = vld [vmem:[%s7] sm:$0x1]
        %v848 = vperm.slane %v846, 0
        %v854 = vunpack.c.l.b16 %v842
        %v855 = vunpack.c.l.b16 %v843
        %v856 = vunpack.c.l.b16 %v844
        %v857 = vunpack.c.l.b16 %v845
        %v858 = vpack.c.b16 %v855, %v854
        %v859 = vpack.c.b16 %v857, %v856
        %vm862 = vcmask 261120
        %v864 = vsel %vm862, %v841, 0
        %866 = vmatpush.bf16.msra.mxu0 0
        %867 = vmatpush.bf16.msra.mxu0 0
        %868 = vmatpush.bf16.msra.mxu0 0
        %869 = vmatpush.bf16.msra.mxu0 0
        %870 = vmatpush.bf16.msra.mxu0 0
        %871 = vmatpush.bf16.msra.mxu0 0
        %872 = vmatpush.bf16.msra.mxu0 %v859
        %873 = vmatpush.bf16.msra.mxu0 %v858
        %874 = vmatmul.bf16.gmra.mxu0 %v864
        %v875 = vpop.f32.mrf.mxu0
        %v876 = vadd.f32 %v848, %v875
        %v877 = vpop.f32.mrf.mxu0
        %878 = vdwg.mxu0
        %v879 = vmul.f32 %v838, %v838
        %vm880 = vcmask 254976
        %v881 = vsel %vm880, %v879, 0.0
        %882 = vadd.xlane.f32.xlu0 %v881
        %v883 = vpop.xlane.xlu0 %882
        %v884 = vmax.f32 %v883, 1e-24
        %v885 = vrsqrt.pop %v884
        %v886 = vmul.f32 %v885, %v884
        %v887 = vmul.f32 %v886, %v885
        %v888 = vmul.f32 0.5, %v887
        %v889 = vsub.f32 1.5, %v888
        %v890 = vmul.f32 %v885, %v889
        %vm891 = vweird.f32 %v884
        %vm892 = vweird.f32 %v885
        %vm893 = vmor %vm891, %vm892
        %v894 = vsel %vm893, %v885, %v890
        %v895 = vmul.f32 %v838, %v894
        %v896 = vmul.f32 %v876, %v876
        %v897 = vsel %vm880, %v896, 0.0
        %898 = vadd.xlane.f32.xlu0 %v897
        %v899 = vpop.xlane.xlu0 %898
        %v900 = vmax.f32 %v899, 1e-24
        %v901 = vrsqrt.pop %v900
        %v902 = vmul.f32 %v901, %v900
        %v903 = vmul.f32 %v902, %v901
        %v904 = vmul.f32 0.5, %v903
        %v905 = vsub.f32 1.5, %v904
        %v906 = vmul.f32 %v901, %v905
        %vm907 = vweird.f32 %v900
        %vm908 = vweird.f32 %v901
        %vm909 = vmor %vm907, %vm908
        %v910 = vsel %vm909, %v901, %v906
        %v911 = vmul.f32 %v876, %v910
        %s912 = sld [smem:[#allocation7]]
        %v913 = vpack.c.bf16 %v895, %v895
        %v914 = vpack.c.bf16 %v911, %v911
        %v916 = vsel %vm862, %v913, 0
        %v919 = vsel %vm862, %v914, 0
        %921 = vmatpush.bf16.xpose.msra.mxu0 0
        %922 = vmatpush.bf16.xpose.msra.mxu0 0
        %923 = vmatpush.bf16.xpose.msra.mxu0 0
        %924 = vmatpush.bf16.xpose.msra.mxu0 0
        %925 = vmatpush.bf16.xpose.msra.mxu0 0
        %926 = vmatpush.bf16.xpose.msra.mxu0 0
        %927 = vmatpush.bf16.xpose.msra.mxu0 0
        %928 = vmatpush.bf16.xpose.msra.mxu0 %v919
        %929 = vmatmul.bf16.gmra.mxu0 %v916
        %v930 = vpop.f32.mrf.mxu0
        %v931 = vadd.f32 0.0, %v930
        %v932 = vpop.f32.mrf.mxu0
        %933 = vdwg.mxu0
        %v934 = vstv %s912
        %v935 = vmul.f32 %v934, %v931
        %vm936 = vcmask 9216
        %937 = vst.msk [vmem:[%s10] sm:$0x3] %vm936, %v935
      $region120: #{dual_encoder_forward.1} parent=51 // pred_fallthru
        _
      // Predicated region
      $region121: #{dual_encoder_forward.1} parent=51 // pred_check
        %p938 = pneg %p216
      $region122: #{dual_encoder_forward.1} parent=51 // pred_check_branch
        %940 = sbr.rel (%p938) target = $region124
      $region123: #{dual_encoder_forward.1} parent=51 // pred_region
        _
      $region124: #{dual_encoder_forward.1} parent=51 // pred_fallthru
        _
      // Predicated region
      $region125: #{dual_encoder_forward.1} parent=51 // pred_check
        %p941 = pneg %p216
      $region126: #{dual_encoder_forward.1} parent=51 // pred_check_branch
        %943 = sbr.rel (%p941) target = $region128
      $region127: #{dual_encoder_forward.1} parent=51 // pred_region
        _
      $region128: #{dual_encoder_forward.1} parent=51 // pred_fallthru
        _
    $region52: #{dual_encoder_forward.1} parent=5 // pred_fallthru
      _
    %p944 = scmp.le.s32.totalorder 2, %s25
    // Predicated region
    $region129: #{dual_encoder_forward.1} parent=5 // pred_check
      %p945 = pneg %p944
    $region130: #{dual_encoder_forward.1} parent=5 // pred_check_branch
      %947 = sbr.rel (%p945) target = $region132
    $region131: #{dual_encoder_forward.1} parent=5 // pred_region
      %s948 = ssub.s32 %s25, 2
    $region132: #{dual_encoder_forward.1} parent=5 // pred_fallthru
      _
  $region6: #{dual_encoder_forward.1} parent=0 // loop_footer
    %s29 = sadd.s32 1, %s25
  $region7: #{dual_encoder_forward.1} parent=0 // loop_footer_branch
    %24 = sbr.rel target = $region3
  $region8: #{dual_encoder_forward.1} parent=0 // loop_exit
    _
  %949 = vsyncmov [#allocation4]
  %s950 = vpop.sfrf %949
  %p951 = scmp.eq.s32.totalorder %s950, 0
  %p952 = pneg %p951
  %954 = shalt.err (%p952)
  %s955 = scalar_lea.sflag [#allocation4], 1
  %956 = vsyncmov %s955
  %s957 = vpop.sfrf %956
  %p958 = scmp.eq.s32.totalorder %s957, 0
  %p959 = pneg %p958
  %961 = shalt.err (%p959)

</llo_original>
